<compile_context>
chip_gen: v7x
topology: tpu7x:2x2x1
jax: 0.10.0
libtpu: 0.0.40
codegen_flags: <defaults>
</compile_context>

<pallas_src>
import functools

import numpy as np
import jax
import jax.numpy as jnp
from jax.experimental import pallas as pl
from jax.experimental.pallas import tpu as pltpu


def find_coordinate_matrix(n_size: int, n_length: float, z_coordinate: float) -> np.ndarray:
    """Coordinates (x, y, z) of each neuron centre — (size, size, 3).

    Not used in the forward pass; kept for parity with the PyTorch module.
    """
    neuron_length = n_length / n_size
    idx = (np.arange(n_size) + 0.5) * neuron_length
    xx, yy = np.meshgrid(idx, idx, indexing="ij")
    zz = np.full_like(xx, z_coordinate)
    return np.stack([xx, yy, zz], axis=-1).astype(np.float64)


def _round_up(x: int, m: int) -> int:
    return (x + m - 1) // m * m


def _choose_tile_rows(size: int, cols_p: int) -> int:
    """Pick a row-tile so one f32 plane tile is ~2 MiB (multiple of 8 sublanes).

    Keeps the double-buffered working set (3 inputs + 1 output, 2 buffers each)
    well under v7x's 64 MiB physical VMEM while being large enough to amortize
    the ~0.35 us per-grid-step overhead on v5e/v6e.
    """
    target_bytes = 2 * 1024 * 1024
    tile = max(8, (target_bytes // (cols_p * 4)) // 8 * 8)
    return int(min(tile, _round_up(size, 8)))


def _diffractive_kernel(xr_ref, xi_ref, wmag_ref, o_ref):
    xr = xr_ref[...]
    xi = xi_ref[...]
    # |x * w| = |x| * |w|  (|w| precomputed once at init; exact algebra).
    o_ref[...] = jnp.sqrt(xr * xr + xi * xi) * wmag_ref[...]


@functools.partial(jax.jit, static_argnames=("size", "tile_r", "rows_p", "cols_p"))
def _diffractive_forward(x_real, x_imag, w_mag, *, size, tile_r, rows_p, cols_p):
    """Batched forward: x planes are (B, size, size), w_mag is (size, size)."""
    batch = x_real.shape[0]

    if rows_p != size or cols_p != size:
        pad3 = ((0, 0), (0, rows_p - size), (0, cols_p - size))
        x_real = jnp.pad(x_real, pad3)
        x_imag = jnp.pad(x_imag, pad3)
        w_mag = jnp.pad(w_mag, pad3[1:])

    grid = (batch, rows_p // tile_r)
    x_spec = pl.BlockSpec((1, tile_r, cols_p), lambda b, i: (b, i, 0))
    w_spec = pl.BlockSpec((tile_r, cols_p), lambda b, i: (i, 0))

    out = pl.pallas_call(
        _diffractive_kernel,
        out_shape=jax.ShapeDtypeStruct((batch, rows_p, cols_p), jnp.float32),
        grid=grid,
        in_specs=[x_spec, x_spec, w_spec],
        out_specs=x_spec,
        compiler_params=pltpu.CompilerParams(
            dimension_semantics=("parallel", "parallel"),
            vmem_limit_bytes=64 * 1024 * 1024,
        ),
    )(x_real, x_imag, w_mag)

    if rows_p != size or cols_p != size:
        out = out[:, :size, :size]
    return out


class DiffractiveLayer:
    """JAX/Pallas port of the PyTorch DiffractiveLayer (forward pass only)."""

    def __init__(self, size: int, length: float, z_coordinate: float, key=None):
        self.size = size
        self.length = length
        self.neuron_length = length / size
        self.z_coordinate = z_coordinate

        if key is None:
            key = jax.random.PRNGKey(0)
        kr, ki = jax.random.split(key)
        # torch.rand(..., dtype=torch.cfloat): real & imag ~ U[0, 1)
        self.w_real = jax.random.uniform(kr, (size, size), dtype=jnp.float32)
        self.w_imag = jax.random.uniform(ki, (size, size), dtype=jnp.float32)
        # Precomputed weight magnitude: forward only needs |w| since
        # |x*w| = |x|*|w|.  NOTE: if weights ever become trainable, recompute
        # w_mag whenever w_real/w_imag change.
        self.w_mag = jnp.sqrt(self.w_real * self.w_real + self.w_imag * self.w_imag)

        self.neuron_coordinates = jnp.asarray(
            find_coordinate_matrix(n_size=size, n_length=length, z_coordinate=z_coordinate)
        )

        # Static tiling plan (lane dim padded to 128, rows to the row tile).
        self._cols_p = _round_up(size, 128)
        self._tile_r = _choose_tile_rows(size, self._cols_p)
        self._rows_p = _round_up(size, self._tile_r)

    def forward(self, x_real: jax.Array, x_imag: jax.Array) -> jax.Array:
        """Accepts (size, size) or batched (B, size, size) real/imag planes."""
        x_real = jnp.asarray(x_real, jnp.float32)
        x_imag = jnp.asarray(x_imag, jnp.float32)
        squeeze = x_real.ndim == 2
        if squeeze:
            x_real = x_real[None]
            x_imag = x_imag[None]
        out = _diffractive_forward(
            x_real, x_imag, self.w_mag,
            size=self.size, tile_r=self._tile_r,
            rows_p=self._rows_p, cols_p=self._cols_p,
        )
        return out[0] if squeeze else out

    __call__ = forward


if __name__ == "__main__":
    size = 128  # number of neurons per row/column
    layer = DiffractiveLayer(size=size, length=0.08, z_coordinate=0.0,
                             key=jax.random.PRNGKey(0))

    # Deterministic complex input fields, carried as real/imag planes.
    k = jax.random.PRNGKey(0)
    kx_r, kx_i = jax.random.split(jax.random.fold_in(k, 1))
    x_real = jax.random.normal(kx_r, (size, size), dtype=jnp.float32)
    x_imag = jax.random.normal(kx_i, (size, size), dtype=jnp.float32)

    # Single-field forward.
    out = layer(x_real, x_imag)
    jax.block_until_ready(out)

    # Batched forward (batch folded into the grid -> one launch for all fields).
    xb_r = jnp.stack([x_real, 2.0 * x_real])
    xb_i = jnp.stack([x_imag, -x_imag])
    out_b = layer(xb_r, xb_i)
    jax.block_until_ready(out_b)

    # Reference check in plain JAX (complex multiply + abs).
    wc = layer.w_real + 1j * layer.w_imag
    ref = jnp.abs((x_real + 1j * x_imag) * wc)
    ref_b = jnp.abs((xb_r + 1j * xb_i) * wc)
    np.testing.assert_allclose(np.asarray(out), np.asarray(ref), rtol=1e-4, atol=1e-5)
    np.testing.assert_allclose(np.asarray(out_b), np.asarray(ref_b), rtol=1e-4, atol=1e-5)

    # TODO(synk): the PyTorch forward also calls print(output.abs()); omitted to
    # keep the required "KERNEL_OK"-only stdout contract.
    print("KERNEL_OK")
</pallas_src>

<mosaic_0001>
module attributes {stable_mosaic.version = 11 : i64} {
  func.func @_diffractive_kernel(%arg0: i32, %arg1: i32, %arg2: memref<1x128x128xf32, #tpu.memory_space<vmem>>, %arg3: memref<1x128x128xf32, #tpu.memory_space<vmem>>, %arg4: memref<128x128xf32, #tpu.memory_space<vmem>>, %arg5: memref<1x128x128xf32, #tpu.memory_space<vmem>>) attributes {dimension_semantics = [#tpu.dimension_semantics<parallel>, #tpu.dimension_semantics<parallel>], iteration_bounds = array<i64: 1, 1>, scalar_prefetch = 0 : i64, scratch_operands = 0 : i64, tpu.core_type = #tpu.core_type<tc>, window_params = [{transform_indices = @transform_0, window_bounds = array<i64: 1, 128, 128>}, {transform_indices = @transform_1, window_bounds = array<i64: 1, 128, 128>}, {transform_indices = @transform_2, window_bounds = array<i64: 128, 128>}, {transform_indices = @transform_3, window_bounds = array<i64: 1, 128, 128>}]} {
    %c0 = arith.constant 0 : index
    %c0_0 = arith.constant 0 : index
    %c0_1 = arith.constant 0 : index
    %0 = vector.load %arg2[%c0, %c0_0, %c0_1] : memref<1x128x128xf32, #tpu.memory_space<vmem>>, vector<1x128x128xf32>
    %c0_2 = arith.constant 0 : index
    %c0_3 = arith.constant 0 : index
    %c0_4 = arith.constant 0 : index
    %1 = vector.load %arg3[%c0_2, %c0_3, %c0_4] : memref<1x128x128xf32, #tpu.memory_space<vmem>>, vector<1x128x128xf32>
    %2 = arith.mulf %0, %0 : vector<1x128x128xf32>
    %3 = arith.mulf %1, %1 : vector<1x128x128xf32>
    %4 = arith.addf %2, %3 : vector<1x128x128xf32>
    %5 = math.sqrt %4 : vector<1x128x128xf32>
    %c0_5 = arith.constant 0 : index
    %c0_6 = arith.constant 0 : index
    %6 = vector.load %arg4[%c0_5, %c0_6] : memref<128x128xf32, #tpu.memory_space<vmem>>, vector<128x128xf32>
    %7 = vector.shape_cast %6 : vector<128x128xf32> to vector<1x128x128xf32>
    %8 = arith.mulf %5, %7 : vector<1x128x128xf32>
    %c0_7 = arith.constant 0 : index
    %c0_8 = arith.constant 0 : index
    %c0_9 = arith.constant 0 : index
    %9 = vector.load %arg5[%c0_7, %c0_8, %c0_9] : memref<1x128x128xf32, #tpu.memory_space<vmem>>, vector<1x128x128xf32>
    tpu.vector_store %arg5[%c0_7, %c0_8, %c0_9], %8 {strides = array<i32>} : memref<1x128x128xf32, #tpu.memory_space<vmem>>, vector<1x128x128xf32>,
    return
  }
  func.func @transform_0(%arg0: i32, %arg1: i32) -> (i32, i32, i32) {
    %c0_i32 = arith.constant 0 : i32
    %c0_i32_0 = arith.constant 0 : i32
    return %arg0, %arg1, %c0_i32 : i32, i32, i32
  }
  func.func @transform_1(%arg0: i32, %arg1: i32) -> (i32, i32, i32) {
    %c0_i32 = arith.constant 0 : i32
    %c0_i32_0 = arith.constant 0 : i32
    return %arg0, %arg1, %c0_i32 : i32, i32, i32
  }
  func.func @transform_2(%arg0: i32, %arg1: i32) -> (i32, i32) {
    %c0_i32 = arith.constant 0 : i32
    %c0_i32_0 = arith.constant 0 : i32
    return %arg1, %c0_i32 : i32, i32
  }
  func.func @transform_3(%arg0: i32, %arg1: i32) -> (i32, i32, i32) {
    %c0_i32 = arith.constant 0 : i32
    %c0_i32_0 = arith.constant 0 : i32
    return %arg0, %arg1, %c0_i32 : i32, i32, i32
  }
}

</mosaic_0001>

<llo_original>
// kernel: _diffractive_forward.1
$region0: #{_diffractive_forward.1}
  #allocation0 [shape = 'u32[]', space=smem, size = 0x4, offset = 0x4, fixed_abs, tag = 'smem constant byte address 0x4 - core index']
  #allocation1 [shape = 'u32[144,128]{1,0:T(1,128)}', space=vmem, size = 0x12000, scoped, tag = 'internal scratch']
  %s0 = inlined_call_operand.hbm [shape: f32[1,128,128], index: 0, kind: input, shape index: {}]
  %s1 = inlined_call_operand.hbm [shape: f32[1,128,128], index: 1, kind: input, shape index: {}]
  %s2 = inlined_call_operand.hbm [shape: f32[128,128], index: 2, kind: input, shape index: {}]
  %s3 = inlined_call_operand.hbm [shape: f32[1,128,128], index: 3, kind: output, shape index: {}]
  %s4 = sld [smem:[#allocation0]]
  $region34: #{_diffractive_forward.1} parent=0
    _
  %s6 = ssub.s32 1, %s4
  %s7 = scalar_select 0, %s6, %s4
  $region1: #{_diffractive_forward.1} parent=0
    #allocation2 [shape = 'u8[65536]{0}', space=vmem, size = 0x10000, scoped, tag = 'input window, operand 0, single buffered']
    #allocation3 [shape = 's32[1]{0}', space=sflag, size = 0x4, scoped, tag = 'scoped memory for _diffractive_forward.1']
    #allocation4 [shape = 's32[1]{0}', space=sflag, size = 0x4, scoped, tag = 'scoped memory for _diffractive_forward.1']
    #allocation5 [shape = 'u8[65536]{0}', space=vmem, size = 0x10000, scoped, tag = 'input window, operand 1, single buffered']
    #allocation6 [shape = 's32[1]{0}', space=sflag, size = 0x4, scoped, tag = 'scoped memory for _diffractive_forward.1']
    #allocation7 [shape = 'u8[65536]{0}', space=vmem, size = 0x10000, scoped, tag = 'input window, operand 2, single buffered']
    #allocation8 [shape = 'u8[65536]{0}', space=vmem, size = 0x10000, scoped, tag = 'output window, operand 0, single buffered']
    %8 = vsyncpa [#allocation3], 0
    %9 = vsyncpa [#allocation6], 0
    %10 = vsyncpa [#allocation4], 0
    // Predicated region
    $region2: #{_diffractive_forward.1} parent=1 // pred_check
      _
    $region3: #{_diffractive_forward.1} parent=1 // pred_check_branch
      %12 = sbr.rel (0) target = $region5
    $region4: #{_diffractive_forward.1} parent=1 // pred_region
      %s14 = ssub.s32 2048, 2048
      %15 = vsyncadd [#allocation3], %s14
      %s16 = sshll.u32 [#allocation2], 4
      %s17 = int_to_ptr.vmem [resolvable:$true] %s16
      %22 = dma.hbm_to_vmem [thread:$0]  %s0, 2048, %s17, [#allocation3], 128, 128, 8
    $region5: #{_diffractive_forward.1} parent=1 // pred_fallthru
      _
    // Predicated region
    $region6: #{_diffractive_forward.1} parent=1 // pred_check
      _
    $region7: #{_diffractive_forward.1} parent=1 // pred_check_branch
      %24 = sbr.rel (0) target = $region9
    $region8: #{_diffractive_forward.1} parent=1 // pred_region
      %s26 = ssub.s32 2048, 2048
      %27 = vsyncadd [#allocation6], %s26
      %s28 = sshll.u32 [#allocation5], 4
      %s29 = int_to_ptr.vmem [resolvable:$true] %s28
      %34 = dma.hbm_to_vmem [thread:$0]  %s1, 2048, %s29, [#allocation6], 128, 128, 8
    $region9: #{_diffractive_forward.1} parent=1 // pred_fallthru
      _
    // Predicated region
    $region10: #{_diffractive_forward.1} parent=1 // pred_check
      _
    $region11: #{_diffractive_forward.1} parent=1 // pred_check_branch
      %36 = sbr.rel (0) target = $region13
    $region12: #{_diffractive_forward.1} parent=1 // pred_region
      %s38 = ssub.s32 2048, 2048
      %39 = vsyncadd [#allocation6], %s38
      %s40 = sshll.u32 [#allocation7], 4
      %s41 = int_to_ptr.vmem [resolvable:$true] %s40
      %46 = dma.hbm_to_vmem [thread:$0]  %s2, 2048, %s41, [#allocation6], 128, 128, 8
    $region13: #{_diffractive_forward.1} parent=1 // pred_fallthru
      _
    // Predicated region
    $region14: #{_diffractive_forward.1} parent=1 // pred_check
      _
    $region15: #{_diffractive_forward.1} parent=1 // pred_check_branch
      %48 = sbr.rel (0) target = $region17
    $region16: #{_diffractive_forward.1} parent=1 // pred_region
      %49 = dma.done [#allocation3], 2048
    $region17: #{_diffractive_forward.1} parent=1 // pred_fallthru
      _
    // Predicated region
    $region18: #{_diffractive_forward.1} parent=1 // pred_check
      _
    $region19: #{_diffractive_forward.1} parent=1 // pred_check_branch
      %51 = sbr.rel (0) target = $region21
    $region20: #{_diffractive_forward.1} parent=1 // pred_region
      %52 = dma.done [#allocation6], 2048
    $region21: #{_diffractive_forward.1} parent=1 // pred_fallthru
      _
    // Predicated region
    $region22: #{_diffractive_forward.1} parent=1 // pred_check
      _
    $region23: #{_diffractive_forward.1} parent=1 // pred_check_branch
      %54 = sbr.rel (0) target = $region25
    $region24: #{_diffractive_forward.1} parent=1 // pred_region
      %55 = dma.done [#allocation6], 2048
    $region25: #{_diffractive_forward.1} parent=1 // pred_fallthru
      _
    %v56 = vld [vmem:[#allocation2] sm:$0xff]
    %v57 = vld [vmem:[#allocation2 + $0x8] sm:$0xff]
    %v58 = vld [vmem:[#allocation2 + $0x10] sm:$0xff]
    %v59 = vld [vmem:[#allocation2 + $0x18] sm:$0xff]
    %v60 = vld [vmem:[#allocation2 + $0x20] sm:$0xff]
    %v61 = vld [vmem:[#allocation2 + $0x28] sm:$0xff]
    %v62 = vld [vmem:[#allocation2 + $0x30] sm:$0xff]
    %v63 = vld [vmem:[#allocation2 + $0x38] sm:$0xff]
    %v64 = vld [vmem:[#allocation2 + $0x40] sm:$0xff]
    %v65 = vld [vmem:[#allocation2 + $0x48] sm:$0xff]
    %v66 = vld [vmem:[#allocation2 + $0x50] sm:$0xff]
    %v67 = vld [vmem:[#allocation2 + $0x58] sm:$0xff]
    %v68 = vld [vmem:[#allocation2 + $0x60] sm:$0xff]
    %v69 = vld [vmem:[#allocation2 + $0x68] sm:$0xff]
    %v70 = vld [vmem:[#allocation2 + $0x70] sm:$0xff]
    %v71 = vld [vmem:[#allocation2 + $0x78] sm:$0xff]
    %v72 = vld [vmem:[#allocation5] sm:$0xff]
    %v73 = vld [vmem:[#allocation5 + $0x8] sm:$0xff]
    %v74 = vld [vmem:[#allocation5 + $0x10] sm:$0xff]
    %v75 = vld [vmem:[#allocation5 + $0x18] sm:$0xff]
    %v76 = vld [vmem:[#allocation5 + $0x20] sm:$0xff]
    %v77 = vld [vmem:[#allocation5 + $0x28] sm:$0xff]
    %v78 = vld [vmem:[#allocation5 + $0x30] sm:$0xff]
    %v79 = vld [vmem:[#allocation5 + $0x38] sm:$0xff]
    %v80 = vld [vmem:[#allocation5 + $0x40] sm:$0xff]
    %v81 = vld [vmem:[#allocation5 + $0x48] sm:$0xff]
    %v82 = vld [vmem:[#allocation5 + $0x50] sm:$0xff]
    %v83 = vld [vmem:[#allocation5 + $0x58] sm:$0xff]
    %v84 = vld [vmem:[#allocation5 + $0x60] sm:$0xff]
    %v85 = vld [vmem:[#allocation5 + $0x68] sm:$0xff]
    %v86 = vld [vmem:[#allocation5 + $0x70] sm:$0xff]
    %v87 = vld [vmem:[#allocation5 + $0x78] sm:$0xff]
    %v88 = vmul.f32 %v56, %v56
    %v89 = vmul.f32 %v57, %v57
    %v90 = vmul.f32 %v58, %v58
    %v91 = vmul.f32 %v59, %v59
    %v92 = vmul.f32 %v60, %v60
    %v93 = vmul.f32 %v61, %v61
    %v94 = vmul.f32 %v62, %v62
    %v95 = vmul.f32 %v63, %v63
    %v96 = vmul.f32 %v64, %v64
    %v97 = vmul.f32 %v65, %v65
    %v98 = vmul.f32 %v66, %v66
    %v99 = vmul.f32 %v67, %v67
    %v100 = vmul.f32 %v68, %v68
    %v101 = vmul.f32 %v69, %v69
    %v102 = vmul.f32 %v70, %v70
    %v103 = vmul.f32 %v71, %v71
    %v104 = vmul.f32 %v72, %v72
    %v105 = vmul.f32 %v73, %v73
    %v106 = vmul.f32 %v74, %v74
    %v107 = vmul.f32 %v75, %v75
    %v108 = vmul.f32 %v76, %v76
    %v109 = vmul.f32 %v77, %v77
    %v110 = vmul.f32 %v78, %v78
    %v111 = vmul.f32 %v79, %v79
    %v112 = vmul.f32 %v80, %v80
    %v113 = vmul.f32 %v81, %v81
    %v114 = vmul.f32 %v82, %v82
    %v115 = vmul.f32 %v83, %v83
    %v116 = vmul.f32 %v84, %v84
    %v117 = vmul.f32 %v85, %v85
    %v118 = vmul.f32 %v86, %v86
    %v119 = vmul.f32 %v87, %v87
    %v120 = vadd.f32 %v88, %v104
    %v121 = vadd.f32 %v89, %v105
    %v122 = vadd.f32 %v90, %v106
    %v123 = vadd.f32 %v91, %v107
    %v124 = vadd.f32 %v92, %v108
    %v125 = vadd.f32 %v93, %v109
    %v126 = vadd.f32 %v94, %v110
    %v127 = vadd.f32 %v95, %v111
    %v128 = vadd.f32 %v96, %v112
    %v129 = vadd.f32 %v97, %v113
    %v130 = vadd.f32 %v98, %v114
    %v131 = vadd.f32 %v99, %v115
    %v132 = vadd.f32 %v100, %v116
    %v133 = vadd.f32 %v101, %v117
    %v134 = vadd.f32 %v102, %v118
    %v135 = vadd.f32 %v103, %v119
    %v136 = vrsqrt.pop %v120
    %v137 = vmul.f32 %v120, %v136
    %vm138 = vcmp.eq.f32.partialorder %v120, inf
    %v139 = vsel %vm138, %v120, %v137
    %vm140 = vcmp.eq.f32.partialorder %v120, 0.0
    %v141 = vand.u32 %v120, 2147483648
    %v142 = vsel %vm140, %v141, %v139
    %v143 = vrsqrt.pop %v121
    %v144 = vmul.f32 %v121, %v143
    %vm145 = vcmp.eq.f32.partialorder %v121, inf
    %v146 = vsel %vm145, %v121, %v144
    %vm147 = vcmp.eq.f32.partialorder %v121, 0.0
    %v148 = vand.u32 %v121, 2147483648
    %v149 = vsel %vm147, %v148, %v146
    %v150 = vrsqrt.pop %v122
    %v151 = vmul.f32 %v122, %v150
    %vm152 = vcmp.eq.f32.partialorder %v122, inf
    %v153 = vsel %vm152, %v122, %v151
    %vm154 = vcmp.eq.f32.partialorder %v122, 0.0
    %v155 = vand.u32 %v122, 2147483648
    %v156 = vsel %vm154, %v155, %v153
    %v157 = vrsqrt.pop %v123
    %v158 = vmul.f32 %v123, %v157
    %vm159 = vcmp.eq.f32.partialorder %v123, inf
    %v160 = vsel %vm159, %v123, %v158
    %vm161 = vcmp.eq.f32.partialorder %v123, 0.0
    %v162 = vand.u32 %v123, 2147483648
    %v163 = vsel %vm161, %v162, %v160
    %v164 = vrsqrt.pop %v124
    %v165 = vmul.f32 %v124, %v164
    %vm166 = vcmp.eq.f32.partialorder %v124, inf
    %v167 = vsel %vm166, %v124, %v165
    %vm168 = vcmp.eq.f32.partialorder %v124, 0.0
    %v169 = vand.u32 %v124, 2147483648
    %v170 = vsel %vm168, %v169, %v167
    %v171 = vrsqrt.pop %v125
    %v172 = vmul.f32 %v125, %v171
    %vm173 = vcmp.eq.f32.partialorder %v125, inf
    %v174 = vsel %vm173, %v125, %v172
    %vm175 = vcmp.eq.f32.partialorder %v125, 0.0
    %v176 = vand.u32 %v125, 2147483648
    %v177 = vsel %vm175, %v176, %v174
    %v178 = vrsqrt.pop %v126
    %v179 = vmul.f32 %v126, %v178
    %vm180 = vcmp.eq.f32.partialorder %v126, inf
    %v181 = vsel %vm180, %v126, %v179
    %vm182 = vcmp.eq.f32.partialorder %v126, 0.0
    %v183 = vand.u32 %v126, 2147483648
    %v184 = vsel %vm182, %v183, %v181
    %v185 = vrsqrt.pop %v127
    %v186 = vmul.f32 %v127, %v185
    %vm187 = vcmp.eq.f32.partialorder %v127, inf
    %v188 = vsel %vm187, %v127, %v186
    %vm189 = vcmp.eq.f32.partialorder %v127, 0.0
    %v190 = vand.u32 %v127, 2147483648
    %v191 = vsel %vm189, %v190, %v188
    %v192 = vrsqrt.pop %v128
    %v193 = vmul.f32 %v128, %v192
    %vm194 = vcmp.eq.f32.partialorder %v128, inf
    %v195 = vsel %vm194, %v128, %v193
    %vm196 = vcmp.eq.f32.partialorder %v128, 0.0
    %v197 = vand.u32 %v128, 2147483648
    %v198 = vsel %vm196, %v197, %v195
    %v199 = vrsqrt.pop %v129
    %v200 = vmul.f32 %v129, %v199
    %vm201 = vcmp.eq.f32.partialorder %v129, inf
    %v202 = vsel %vm201, %v129, %v200
    %vm203 = vcmp.eq.f32.partialorder %v129, 0.0
    %v204 = vand.u32 %v129, 2147483648
    %v205 = vsel %vm203, %v204, %v202
    %v206 = vrsqrt.pop %v130
    %v207 = vmul.f32 %v130, %v206
    %vm208 = vcmp.eq.f32.partialorder %v130, inf
    %v209 = vsel %vm208, %v130, %v207
    %vm210 = vcmp.eq.f32.partialorder %v130, 0.0
    %v211 = vand.u32 %v130, 2147483648
    %v212 = vsel %vm210, %v211, %v209
    %v213 = vrsqrt.pop %v131
    %v214 = vmul.f32 %v131, %v213
    %vm215 = vcmp.eq.f32.partialorder %v131, inf
    %v216 = vsel %vm215, %v131, %v214
    %vm217 = vcmp.eq.f32.partialorder %v131, 0.0
    %v218 = vand.u32 %v131, 2147483648
    %v219 = vsel %vm217, %v218, %v216
    %v220 = vrsqrt.pop %v132
    %v221 = vmul.f32 %v132, %v220
    %vm222 = vcmp.eq.f32.partialorder %v132, inf
    %v223 = vsel %vm222, %v132, %v221
    %vm224 = vcmp.eq.f32.partialorder %v132, 0.0
    %v225 = vand.u32 %v132, 2147483648
    %v226 = vsel %vm224, %v225, %v223
    %v227 = vrsqrt.pop %v133
    %v228 = vmul.f32 %v133, %v227
    %vm229 = vcmp.eq.f32.partialorder %v133, inf
    %v230 = vsel %vm229, %v133, %v228
    %vm231 = vcmp.eq.f32.partialorder %v133, 0.0
    %v232 = vand.u32 %v133, 2147483648
    %v233 = vsel %vm231, %v232, %v230
    %v234 = vrsqrt.pop %v134
    %v235 = vmul.f32 %v134, %v234
    %vm236 = vcmp.eq.f32.partialorder %v134, inf
    %v237 = vsel %vm236, %v134, %v235
    %vm238 = vcmp.eq.f32.partialorder %v134, 0.0
    %v239 = vand.u32 %v134, 2147483648
    %v240 = vsel %vm238, %v239, %v237
    %v241 = vrsqrt.pop %v135
    %v242 = vmul.f32 %v135, %v241
    %vm243 = vcmp.eq.f32.partialorder %v135, inf
    %v244 = vsel %vm243, %v135, %v242
    %vm245 = vcmp.eq.f32.partialorder %v135, 0.0
    %v246 = vand.u32 %v135, 2147483648
    %v247 = vsel %vm245, %v246, %v244
    %v248 = vld [vmem:[#allocation7] sm:$0xff]
    %v249 = vld [vmem:[#allocation7 + $0x8] sm:$0xff]
    %v250 = vld [vmem:[#allocation7 + $0x10] sm:$0xff]
    %v251 = vld [vmem:[#allocation7 + $0x18] sm:$0xff]
    %v252 = vld [vmem:[#allocation7 + $0x20] sm:$0xff]
    %v253 = vld [vmem:[#allocation7 + $0x28] sm:$0xff]
    %v254 = vld [vmem:[#allocation7 + $0x30] sm:$0xff]
    %v255 = vld [vmem:[#allocation7 + $0x38] sm:$0xff]
    %v256 = vld [vmem:[#allocation7 + $0x40] sm:$0xff]
    %v257 = vld [vmem:[#allocation7 + $0x48] sm:$0xff]
    %v258 = vld [vmem:[#allocation7 + $0x50] sm:$0xff]
    %v259 = vld [vmem:[#allocation7 + $0x58] sm:$0xff]
    %v260 = vld [vmem:[#allocation7 + $0x60] sm:$0xff]
    %v261 = vld [vmem:[#allocation7 + $0x68] sm:$0xff]
    %v262 = vld [vmem:[#allocation7 + $0x70] sm:$0xff]
    %v263 = vld [vmem:[#allocation7 + $0x78] sm:$0xff]
    %v264 = vmul.f32 %v142, %v248
    %v265 = vmul.f32 %v149, %v249
    %v266 = vmul.f32 %v156, %v250
    %v267 = vmul.f32 %v163, %v251
    %v268 = vmul.f32 %v170, %v252
    %v269 = vmul.f32 %v177, %v253
    %v270 = vmul.f32 %v184, %v254
    %v271 = vmul.f32 %v191, %v255
    %v272 = vmul.f32 %v198, %v256
    %v273 = vmul.f32 %v205, %v257
    %v274 = vmul.f32 %v212, %v258
    %v275 = vmul.f32 %v219, %v259
    %v276 = vmul.f32 %v226, %v260
    %v277 = vmul.f32 %v233, %v261
    %v278 = vmul.f32 %v240, %v262
    %v279 = vmul.f32 %v247, %v263
    %280 = vst [vmem:[#allocation8] sm:$0xff] %v264
    %281 = vst [vmem:[#allocation8 + $0x8] sm:$0xff] %v265
    %282 = vst [vmem:[#allocation8 + $0x10] sm:$0xff] %v266
    %283 = vst [vmem:[#allocation8 + $0x18] sm:$0xff] %v267
    %284 = vst [vmem:[#allocation8 + $0x20] sm:$0xff] %v268
    %285 = vst [vmem:[#allocation8 + $0x28] sm:$0xff] %v269
    %286 = vst [vmem:[#allocation8 + $0x30] sm:$0xff] %v270
    %287 = vst [vmem:[#allocation8 + $0x38] sm:$0xff] %v271
    %288 = vst [vmem:[#allocation8 + $0x40] sm:$0xff] %v272
    %289 = vst [vmem:[#allocation8 + $0x48] sm:$0xff] %v273
    %290 = vst [vmem:[#allocation8 + $0x50] sm:$0xff] %v274
    %291 = vst [vmem:[#allocation8 + $0x58] sm:$0xff] %v275
    %292 = vst [vmem:[#allocation8 + $0x60] sm:$0xff] %v276
    %293 = vst [vmem:[#allocation8 + $0x68] sm:$0xff] %v277
    %294 = vst [vmem:[#allocation8 + $0x70] sm:$0xff] %v278
    %295 = vst [vmem:[#allocation8 + $0x78] sm:$0xff] %v279
    // Predicated region
    $region26: #{_diffractive_forward.1} parent=1 // pred_check
      _
    $region27: #{_diffractive_forward.1} parent=1 // pred_check_branch
      %297 = sbr.rel (0) target = $region29
    $region28: #{_diffractive_forward.1} parent=1 // pred_region
      %s299 = ssub.s32 2048, 2048
      %300 = vsyncadd [#allocation4], %s299
      %s301 = sshll.u32 [#allocation8], 4
      %s302 = int_to_ptr.vmem [resolvable:$true] %s301
      %307 = dma.vmem_to_hbm [thread:$0]  %s302, 2048, %s3, [#allocation4], 128, 128, 8
    $region29: #{_diffractive_forward.1} parent=1 // pred_fallthru
      _
    // Predicated region
    $region30: #{_diffractive_forward.1} parent=1 // pred_check
      _
    $region31: #{_diffractive_forward.1} parent=1 // pred_check_branch
      %309 = sbr.rel (0) target = $region33
    $region32: #{_diffractive_forward.1} parent=1 // pred_region
      %310 = dma.done [#allocation4], 2048
    $region33: #{_diffractive_forward.1} parent=1 // pred_fallthru
      _
    %311 = vsyncpa [#allocation3], 1
    %312 = vsyncpa [#allocation6], 1
    %313 = vsyncpa [#allocation4], 1

</llo_original>
